<compile_context>
chip_gen: v5e
topology: v5e:2x2
jax: 0.10.0
libtpu: 0.0.40
codegen_flags: <defaults>
</compile_context>

<pallas_src>
import jax
import jax.numpy as jnp
from jax.experimental import pallas as pl
from jax.experimental.pallas import tpu as pltpu


# ----------------------------- host-side prep --------------------------------
def _conv_as_matmul(w, w_in):
    """(Co, Ci, 1, K) conv weight -> dense (Ci*w_in, Co*w_out) matrix.

    M[c*w_in + wi, o*w_out + wo] = w[o, c, 0, wi - wo] if 0 <= wi - wo < K.
    A (c, w) row-major flattened input row times M gives the (o, w) flattened
    valid 1-D convolution along width.
    """
    co, ci, _, k = w.shape
    w_out = w_in - k + 1
    wi = jnp.arange(w_in)[:, None]                       # (w_in, 1)
    wo = jnp.arange(w_out)[None, :]                      # (1, w_out)
    tap = wi - wo                                        # (w_in, w_out)
    valid = ((tap >= 0) & (tap < k)).astype(w.dtype)
    tap = jnp.clip(tap, 0, k - 1)
    w_k = w[:, :, 0, :]                                  # (Co, Ci, K)
    taps = jnp.take(w_k, tap, axis=2)                    # (Co, Ci, w_in, w_out)
    taps = taps * valid[None, None]
    return jnp.transpose(taps, (1, 2, 0, 3)).reshape(ci * w_in, co * w_out)


def _pool_selector(n_ch, w_in, offset):
    """0/1 selector (n_ch*w_in, n_ch*(w_in//2)) picking column 2*wo+offset of
    each channel block. Floor mode: a trailing odd column is dropped, matching
    PyTorch MaxPool2d((1, 2))."""
    w_out = w_in // 2
    wi = jnp.arange(w_in)[:, None]
    wo = jnp.arange(w_out)[None, :]
    sel = (wi == 2 * wo + offset).astype(jnp.float32)    # (w_in, w_out)
    eye = jnp.eye(n_ch, dtype=jnp.float32)
    blk = eye[:, None, :, None] * sel[None, :, None, :]  # (c, wi, c', wo)
    return blk.reshape(n_ch * w_in, n_ch * w_out)


# ----------------------------- feature kernel --------------------------------
def features_kernel(x_ref, m1_ref, b1_ref, p1e_ref, p1o_ref,
                    m2_ref, b2_ref, p2e_ref, p2o_ref, o_ref):
    x = x_ref[...]                                            # (TB, C*W)
    # conv1 + bias + ReLU
    y = jnp.dot(x, m1_ref[...], preferred_element_type=jnp.float32)
    y = jnp.maximum(y + b1_ref[...], 0.0)                     # (TB, Co1*W1out)
    # max-pool (1,2): max of even/odd column selections (exact, f32)
    y = jnp.maximum(
        jnp.dot(y, p1e_ref[...], preferred_element_type=jnp.float32),
        jnp.dot(y, p1o_ref[...], preferred_element_type=jnp.float32))
    # conv2 + bias + ReLU
    y = jnp.dot(y, m2_ref[...], preferred_element_type=jnp.float32)
    y = jnp.maximum(y + b2_ref[...], 0.0)                     # (TB, Co2*W2out)
    # max-pool (1,2)
    y = jnp.maximum(
        jnp.dot(y, p2e_ref[...], preferred_element_type=jnp.float32),
        jnp.dot(y, p2o_ref[...], preferred_element_type=jnp.float32))
    o_ref[...] = y.astype(o_ref.dtype)                        # (TB, Co2*Wp2)


# ---------------------------- classifier kernel ------------------------------
def classifier_kernel(x_ref, w1_ref, b1_ref, w2_ref, b2_ref, o_ref):
    h = jnp.dot(x_ref[...], w1_ref[...], preferred_element_type=jnp.float32)
    h = jnp.maximum(h + b1_ref[...], 0.0)
    logits = jnp.dot(h, w2_ref[...], preferred_element_type=jnp.float32)
    logits = logits + b2_ref[...]
    m = jnp.max(logits, axis=-1, keepdims=True)               # softmax(dim=1)
    e = jnp.exp(logits - m)
    s = jnp.sum(e, axis=-1, keepdims=True)
    o_ref[...] = (e * pl.reciprocal(s, approx=True)).astype(o_ref.dtype)


# --------------------------------- wrapper ------------------------------------
@jax.jit
def lenet5_forward(x, params):
    """x: (N, C, H, W) float32 — same semantics as the PyTorch module."""
    conv1_w, conv1_b, conv2_w, conv2_b, fc1_w, fc1_b, fc2_w, fc2_b = params
    N, C, H, W = x.shape
    K = conv1_w.shape[-1]
    Co1, Co2 = conv1_w.shape[0], conv2_w.shape[0]
    fc, n_classes = fc1_w.shape[0], fc2_w.shape[0]

    w1out = W - K + 1
    wp1 = w1out // 2
    w2out = wp1 - K + 1
    wp2 = w2out // 2

    F1 = Co1 * w1out
    Fp1 = Co1 * wp1
    F2 = Co2 * w2out
    F = Co2 * wp2
    flat = H * F                       # == flatten_factor * Co2

    # --- resident constants (tiny, built once per call on the host side) ---
    M1 = _conv_as_matmul(conv1_w, W)
    M2 = _conv_as_matmul(conv2_w, wp1)
    b1r = jnp.repeat(conv1_b, w1out)[None, :]
    b2r = jnp.repeat(conv2_b, w2out)[None, :]
    P1e = _pool_selector(Co1, w1out, 0)
    P1o = _pool_selector(Co1, w1out, 1)
    P2e = _pool_selector(Co2, w2out, 0)
    P2o = _pool_selector(Co2, w2out, 1)

    # fc1 expects PyTorch flatten order (co2, h, wp2); feature rows produce
    # (h, co2, wp2) — permute the weight columns instead of the activations.
    fc1_perm = fc1_w.reshape(fc, Co2, H, wp2).transpose(0, 2, 1, 3)
    w1t = fc1_perm.reshape(fc, flat).T                  # (flat, fc)
    w2t = fc2_w.T                                       # (fc, classes)

    # (N, C, H, W) -> (N*H, C*W). The only remaining host transpose (input is
    # the smallest tensor; the activation-side transpose was folded into w1t).
    x_rows = jnp.transpose(x, (0, 2, 1, 3)).reshape(N * H, C * W)

    NR = N * H
    TB = min(1024, NR)   # big row blocks; VMEM use stays in the KB range here

    feat = pl.pallas_call(
        features_kernel,
        out_shape=jax.ShapeDtypeStruct((NR, F), jnp.float32),
        grid=(pl.cdiv(NR, TB),),
        in_specs=[
            pl.BlockSpec((TB, C * W), lambda i: (i, 0)),
            pl.BlockSpec((C * W, F1), lambda i: (0, 0)),
            pl.BlockSpec((1, F1), lambda i: (0, 0)),
            pl.BlockSpec((F1, Fp1), lambda i: (0, 0)),
            pl.BlockSpec((F1, Fp1), lambda i: (0, 0)),
            pl.BlockSpec((Fp1, F2), lambda i: (0, 0)),
            pl.BlockSpec((1, F2), lambda i: (0, 0)),
            pl.BlockSpec((F2, F), lambda i: (0, 0)),
            pl.BlockSpec((F2, F), lambda i: (0, 0)),
        ],
        out_specs=pl.BlockSpec((TB, F), lambda i: (i, 0)),
        compiler_params=pltpu.CompilerParams(
            dimension_semantics=("parallel",)),
    )(x_rows, M1, b1r, P1e, P1o, M2, b2r, P2e, P2o)

    # (N*H, F) -> (N, H*F): pure reshape, no transpose, thanks to the fc1
    # column permutation above.
    flat_x = feat.reshape(N, flat)

    TBN = min(256, N)
    out = pl.pallas_call(
        classifier_kernel,
        out_shape=jax.ShapeDtypeStruct((N, n_classes), jnp.float32),
        grid=(pl.cdiv(N, TBN),),
        in_specs=[
            pl.BlockSpec((TBN, flat), lambda i: (i, 0)),
            pl.BlockSpec((flat, fc), lambda i: (0, 0)),
            pl.BlockSpec((1, fc), lambda i: (0, 0)),
            pl.BlockSpec((fc, n_classes), lambda i: (0, 0)),
            pl.BlockSpec((1, n_classes), lambda i: (0, 0)),
        ],
        out_specs=pl.BlockSpec((TBN, n_classes), lambda i: (i, 0)),
        compiler_params=pltpu.CompilerParams(
            dimension_semantics=("parallel",)),
    )(flat_x, w1t, fc1_b[None, :], w2t, fc2_b[None, :])
    return out


def init_params(key, in_channel, out1_channel, out2_channel, fc, out_classes,
                kernel_size, flatten_factor):
    ks = jax.random.split(key, 8)
    scale = 0.1
    conv1_w = scale * jax.random.normal(
        ks[0], (out1_channel, in_channel, 1, kernel_size), jnp.float32)
    conv1_b = scale * jax.random.normal(ks[1], (out1_channel,), jnp.float32)
    conv2_w = scale * jax.random.normal(
        ks[2], (out2_channel, out1_channel, 1, kernel_size), jnp.float32)
    conv2_b = scale * jax.random.normal(ks[3], (out2_channel,), jnp.float32)
    fc1_w = scale * jax.random.normal(
        ks[4], (fc, flatten_factor * out2_channel), jnp.float32)
    fc1_b = scale * jax.random.normal(ks[5], (fc,), jnp.float32)
    fc2_w = scale * jax.random.normal(ks[6], (out_classes, fc), jnp.float32)
    fc2_b = scale * jax.random.normal(ks[7], (out_classes,), jnp.float32)
    return (conv1_w, conv1_b, conv2_w, conv2_b, fc1_w, fc1_b, fc2_w, fc2_b)


if __name__ == "__main__":
    # Small, self-consistent hyperparameters.
    N, C, H, W = 2, 4, 16, 16
    out1, out2, fc, classes, K = 8, 16, 32, 10, 3
    # width: 16 -conv-> 14 -pool-> 7 -conv-> 5 -pool-> 2  => flatten = H*2*out2
    wp2 = ((W - K + 1) // 2 - K + 1) // 2
    flatten_factor = H * wp2

    key = jax.random.PRNGKey(0)
    pkey, xkey = jax.random.split(key)
    params = init_params(pkey, C, out1, out2, fc, classes, K, flatten_factor)
    x = jax.random.normal(xkey, (N, C, H, W), jnp.float32)

    out = lenet5_forward(x, params)
    out = jax.block_until_ready(out)
    assert out.shape == (N, classes)
    assert bool(jnp.all(jnp.isfinite(out)))
    print("KERNEL_OK")
</pallas_src>

<mosaic_0001>
module attributes {stable_mosaic.version = 11 : i64} {
  func.func @features_kernel(%arg0: i32, %arg1: memref<32x64xf32, #tpu.memory_space<vmem>>, %arg2: memref<64x112xf32, #tpu.memory_space<vmem>>, %arg3: memref<1x112xf32, #tpu.memory_space<vmem>>, %arg4: memref<112x56xf32, #tpu.memory_space<vmem>>, %arg5: memref<112x56xf32, #tpu.memory_space<vmem>>, %arg6: memref<56x80xf32, #tpu.memory_space<vmem>>, %arg7: memref<1x80xf32, #tpu.memory_space<vmem>>, %arg8: memref<80x32xf32, #tpu.memory_space<vmem>>, %arg9: memref<80x32xf32, #tpu.memory_space<vmem>>, %arg10: memref<32x32xf32, #tpu.memory_space<vmem>>) attributes {dimension_semantics = [#tpu.dimension_semantics<parallel>], iteration_bounds = array<i64: 1>, scalar_prefetch = 0 : i64, scratch_operands = 0 : i64, tpu.core_type = #tpu.core_type<tc>, window_params = [{transform_indices = @transform_0, window_bounds = array<i64: 32, 64>}, {pipeline_mode = #tpu.pipeline_mode<synchronous>, transform_indices = @transform_1, window_bounds = array<i64: 64, 112>}, {pipeline_mode = #tpu.pipeline_mode<synchronous>, transform_indices = @transform_2, window_bounds = array<i64: 1, 112>}, {pipeline_mode = #tpu.pipeline_mode<synchronous>, transform_indices = @transform_3, window_bounds = array<i64: 112, 56>}, {pipeline_mode = #tpu.pipeline_mode<synchronous>, transform_indices = @transform_4, window_bounds = array<i64: 112, 56>}, {pipeline_mode = #tpu.pipeline_mode<synchronous>, transform_indices = @transform_5, window_bounds = array<i64: 56, 80>}, {pipeline_mode = #tpu.pipeline_mode<synchronous>, transform_indices = @transform_6, window_bounds = array<i64: 1, 80>}, {pipeline_mode = #tpu.pipeline_mode<synchronous>, transform_indices = @transform_7, window_bounds = array<i64: 80, 32>}, {pipeline_mode = #tpu.pipeline_mode<synchronous>, transform_indices = @transform_8, window_bounds = array<i64: 80, 32>}, {transform_indices = @transform_9, window_bounds = array<i64: 32, 32>}]} {
    %c0 = arith.constant 0 : index
    %c0_0 = arith.constant 0 : index
    %0 = vector.load %arg1[%c0, %c0_0] : memref<32x64xf32, #tpu.memory_space<vmem>>, vector<32x64xf32>
    %c0_1 = arith.constant 0 : index
    %c0_2 = arith.constant 0 : index
    %1 = vector.load %arg2[%c0_1, %c0_2] : memref<64x112xf32, #tpu.memory_space<vmem>>, vector<64x112xf32>
    %cst = arith.constant dense<0.000000e+00> : vector<32x112xf32>
    %2 = tpu.matmul %0, %1, %cst {dimension_numbers = #tpu.dot_dimension_numbers<[1], [0], [0], [1], [0, 0, 1, 1], [], []>} : vector<32x64xf32>, vector<64x112xf32>, vector<32x112xf32> -> vector<32x112xf32>
    %c0_3 = arith.constant 0 : index
    %c0_4 = arith.constant 0 : index
    %3 = vector.load %arg3[%c0_3, %c0_4] : memref<1x112xf32, #tpu.memory_space<vmem>>, vector<1x112xf32>
    %4 = vector.broadcast %3 : vector<1x112xf32> to vector<32x112xf32>
    %5 = arith.addf %2, %4 : vector<32x112xf32>
    %cst_5 = arith.constant 0.000000e+00 : f32
    %6 = vector.broadcast %cst_5 : f32 to vector<32x112xf32>
    %7 = arith.maximumf %5, %6 : vector<32x112xf32>
    %c0_6 = arith.constant 0 : index
    %c0_7 = arith.constant 0 : index
    %8 = vector.load %arg4[%c0_6, %c0_7] : memref<112x56xf32, #tpu.memory_space<vmem>>, vector<112x56xf32>
    %cst_8 = arith.constant dense<0.000000e+00> : vector<32x56xf32>
    %9 = tpu.matmul %7, %8, %cst_8 {dimension_numbers = #tpu.dot_dimension_numbers<[1], [0], [0], [1], [0, 0, 1, 1], [], []>} : vector<32x112xf32>, vector<112x56xf32>, vector<32x56xf32> -> vector<32x56xf32>
    %c0_9 = arith.constant 0 : index
    %c0_10 = arith.constant 0 : index
    %10 = vector.load %arg5[%c0_9, %c0_10] : memref<112x56xf32, #tpu.memory_space<vmem>>, vector<112x56xf32>
    %cst_11 = arith.constant dense<0.000000e+00> : vector<32x56xf32>
    %11 = tpu.matmul %7, %10, %cst_11 {dimension_numbers = #tpu.dot_dimension_numbers<[1], [0], [0], [1], [0, 0, 1, 1], [], []>} : vector<32x112xf32>, vector<112x56xf32>, vector<32x56xf32> -> vector<32x56xf32>
    %12 = arith.maximumf %9, %11 : vector<32x56xf32>
    %c0_12 = arith.constant 0 : index
    %c0_13 = arith.constant 0 : index
    %13 = vector.load %arg6[%c0_12, %c0_13] : memref<56x80xf32, #tpu.memory_space<vmem>>, vector<56x80xf32>
    %cst_14 = arith.constant dense<0.000000e+00> : vector<32x80xf32>
    %14 = tpu.matmul %12, %13, %cst_14 {dimension_numbers = #tpu.dot_dimension_numbers<[1], [0], [0], [1], [0, 0, 1, 1], [], []>} : vector<32x56xf32>, vector<56x80xf32>, vector<32x80xf32> -> vector<32x80xf32>
    %c0_15 = arith.constant 0 : index
    %c0_16 = arith.constant 0 : index
    %15 = vector.load %arg7[%c0_15, %c0_16] : memref<1x80xf32, #tpu.memory_space<vmem>>, vector<1x80xf32>
    %16 = vector.broadcast %15 : vector<1x80xf32> to vector<32x80xf32>
    %17 = arith.addf %14, %16 : vector<32x80xf32>
    %cst_17 = arith.constant 0.000000e+00 : f32
    %18 = vector.broadcast %cst_17 : f32 to vector<32x80xf32>
    %19 = arith.maximumf %17, %18 : vector<32x80xf32>
    %c0_18 = arith.constant 0 : index
    %c0_19 = arith.constant 0 : index
    %20 = vector.load %arg8[%c0_18, %c0_19] : memref<80x32xf32, #tpu.memory_space<vmem>>, vector<80x32xf32>
    %cst_20 = arith.constant dense<0.000000e+00> : vector<32x32xf32>
    %21 = tpu.matmul %19, %20, %cst_20 {dimension_numbers = #tpu.dot_dimension_numbers<[1], [0], [0], [1], [0, 0, 1, 1], [], []>} : vector<32x80xf32>, vector<80x32xf32>, vector<32x32xf32> -> vector<32x32xf32>
    %c0_21 = arith.constant 0 : index
    %c0_22 = arith.constant 0 : index
    %22 = vector.load %arg9[%c0_21, %c0_22] : memref<80x32xf32, #tpu.memory_space<vmem>>, vector<80x32xf32>
    %cst_23 = arith.constant dense<0.000000e+00> : vector<32x32xf32>
    %23 = tpu.matmul %19, %22, %cst_23 {dimension_numbers = #tpu.dot_dimension_numbers<[1], [0], [0], [1], [0, 0, 1, 1], [], []>} : vector<32x80xf32>, vector<80x32xf32>, vector<32x32xf32> -> vector<32x32xf32>
    %24 = arith.maximumf %21, %23 : vector<32x32xf32>
    %c0_24 = arith.constant 0 : index
    %c0_25 = arith.constant 0 : index
    %25 = vector.load %arg10[%c0_24, %c0_25] : memref<32x32xf32, #tpu.memory_space<vmem>>, vector<32x32xf32>
    tpu.vector_store %arg10[%c0_24, %c0_25], %24 {strides = array<i32>} : memref<32x32xf32, #tpu.memory_space<vmem>>, vector<32x32xf32>,
    return
  }
  func.func @transform_0(%arg0: i32) -> (i32, i32) {
    %c0_i32 = arith.constant 0 : i32
    %c0_i32_0 = arith.constant 0 : i32
    return %arg0, %c0_i32 : i32, i32
  }
  func.func @transform_1(%arg0: i32) -> (i32, i32) {
    %c0_i32 = arith.constant 0 : i32
    %c0_i32_0 = arith.constant 0 : i32
    %c0_i32_1 = arith.constant 0 : i32
    return %c0_i32, %c0_i32_0 : i32, i32
  }
  func.func @transform_2(%arg0: i32) -> (i32, i32) {
    %c0_i32 = arith.constant 0 : i32
    %c0_i32_0 = arith.constant 0 : i32
    %c0_i32_1 = arith.constant 0 : i32
    return %c0_i32, %c0_i32_0 : i32, i32
  }
  func.func @transform_3(%arg0: i32) -> (i32, i32) {
    %c0_i32 = arith.constant 0 : i32
    %c0_i32_0 = arith.constant 0 : i32
    %c0_i32_1 = arith.constant 0 : i32
    return %c0_i32, %c0_i32_0 : i32, i32
  }
  func.func @transform_4(%arg0: i32) -> (i32, i32) {
    %c0_i32 = arith.constant 0 : i32
    %c0_i32_0 = arith.constant 0 : i32
    %c0_i32_1 = arith.constant 0 : i32
    return %c0_i32, %c0_i32_0 : i32, i32
  }
  func.func @transform_5(%arg0: i32) -> (i32, i32) {
    %c0_i32 = arith.constant 0 : i32
    %c0_i32_0 = arith.constant 0 : i32
    %c0_i32_1 = arith.constant 0 : i32
    return %c0_i32, %c0_i32_0 : i32, i32
  }
  func.func @transform_6(%arg0: i32) -> (i32, i32) {
    %c0_i32 = arith.constant 0 : i32
    %c0_i32_0 = arith.constant 0 : i32
    %c0_i32_1 = arith.constant 0 : i32
    return %c0_i32, %c0_i32_0 : i32, i32
  }
  func.func @transform_7(%arg0: i32) -> (i32, i32) {
    %c0_i32 = arith.constant 0 : i32
    %c0_i32_0 = arith.constant 0 : i32
    %c0_i32_1 = arith.constant 0 : i32
    return %c0_i32, %c0_i32_0 : i32, i32
  }
  func.func @transform_8(%arg0: i32) -> (i32, i32) {
    %c0_i32 = arith.constant 0 : i32
    %c0_i32_0 = arith.constant 0 : i32
    %c0_i32_1 = arith.constant 0 : i32
    return %c0_i32, %c0_i32_0 : i32, i32
  }
  func.func @transform_9(%arg0: i32) -> (i32, i32) {
    %c0_i32 = arith.constant 0 : i32
    %c0_i32_0 = arith.constant 0 : i32
    return %arg0, %c0_i32 : i32, i32
  }
}

module attributes {stable_mosaic.version = 11 : i64} {
  func.func @classifier_kernel(%arg0: i32, %arg1: memref<2x512xf32, #tpu.memory_space<vmem>>, %arg2: memref<512x32xf32, #tpu.memory_space<vmem>>, %arg3: memref<1x32xf32, #tpu.memory_space<vmem>>, %arg4: memref<32x10xf32, #tpu.memory_space<vmem>>, %arg5: memref<1x10xf32, #tpu.memory_space<vmem>>, %arg6: memref<2x10xf32, #tpu.memory_space<vmem>>) attributes {dimension_semantics = [#tpu.dimension_semantics<parallel>], iteration_bounds = array<i64: 1>, scalar_prefetch = 0 : i64, scratch_operands = 0 : i64, tpu.core_type = #tpu.core_type<tc>, window_params = [{transform_indices = @transform_0, window_bounds = array<i64: 2, 512>}, {pipeline_mode = #tpu.pipeline_mode<synchronous>, transform_indices = @transform_1, window_bounds = array<i64: 512, 32>}, {pipeline_mode = #tpu.pipeline_mode<synchronous>, transform_indices = @transform_2, window_bounds = array<i64: 1, 32>}, {pipeline_mode = #tpu.pipeline_mode<synchronous>, transform_indices = @transform_3, window_bounds = array<i64: 32, 10>}, {pipeline_mode = #tpu.pipeline_mode<synchronous>, transform_indices = @transform_4, window_bounds = array<i64: 1, 10>}, {transform_indices = @transform_5, window_bounds = array<i64: 2, 10>}]} {
    %c0 = arith.constant 0 : index
    %c0_0 = arith.constant 0 : index
    %0 = vector.load %arg1[%c0, %c0_0] : memref<2x512xf32, #tpu.memory_space<vmem>>, vector<2x512xf32>
    %c0_1 = arith.constant 0 : index
    %c0_2 = arith.constant 0 : index
    %1 = vector.load %arg2[%c0_1, %c0_2] : memref<512x32xf32, #tpu.memory_space<vmem>>, vector<512x32xf32>
    %cst = arith.constant dense<0.000000e+00> : vector<2x32xf32>
    %2 = tpu.matmul %0, %1, %cst {dimension_numbers = #tpu.dot_dimension_numbers<[1], [0], [0], [1], [0, 0, 1, 1], [], []>} : vector<2x512xf32>, vector<512x32xf32>, vector<2x32xf32> -> vector<2x32xf32>
    %c0_3 = arith.constant 0 : index
    %c0_4 = arith.constant 0 : index
    %3 = vector.load %arg3[%c0_3, %c0_4] : memref<1x32xf32, #tpu.memory_space<vmem>>, vector<1x32xf32>
    %4 = vector.broadcast %3 : vector<1x32xf32> to vector<2x32xf32>
    %5 = arith.addf %2, %4 : vector<2x32xf32>
    %cst_5 = arith.constant 0.000000e+00 : f32
    %6 = vector.broadcast %cst_5 : f32 to vector<2x32xf32>
    %7 = arith.maximumf %5, %6 : vector<2x32xf32>
    %c0_6 = arith.constant 0 : index
    %c0_7 = arith.constant 0 : index
    %8 = vector.load %arg4[%c0_6, %c0_7] : memref<32x10xf32, #tpu.memory_space<vmem>>, vector<32x10xf32>
    %cst_8 = arith.constant dense<0.000000e+00> : vector<2x10xf32>
    %9 = tpu.matmul %7, %8, %cst_8 {dimension_numbers = #tpu.dot_dimension_numbers<[1], [0], [0], [1], [0, 0, 1, 1], [], []>} : vector<2x32xf32>, vector<32x10xf32>, vector<2x10xf32> -> vector<2x10xf32>
    %c0_9 = arith.constant 0 : index
    %c0_10 = arith.constant 0 : index
    %10 = vector.load %arg5[%c0_9, %c0_10] : memref<1x10xf32, #tpu.memory_space<vmem>>, vector<1x10xf32>
    %11 = vector.broadcast %10 : vector<1x10xf32> to vector<2x10xf32>
    %12 = arith.addf %9, %11 : vector<2x10xf32>
    %cst_11 = arith.constant dense<0xFF800000> : vector<2xf32>
    %13 = vector.multi_reduction <maximumf>, %12, %cst_11 [1] : vector<2x10xf32> to vector<2xf32>
    %14 = vector.shape_cast %13 : vector<2xf32> to vector<2x1xf32>
    %15 = vector.broadcast %14 : vector<2x1xf32> to vector<2x10xf32>
    %16 = arith.subf %12, %15 : vector<2x10xf32>
    %17 = math.exp %16 : vector<2x10xf32>
    %cst_12 = arith.constant dense<0.000000e+00> : vector<2xf32>
    %18 = vector.multi_reduction <add>, %17, %cst_12 [1] : vector<2x10xf32> to vector<2xf32>
    %19 = vector.shape_cast %18 : vector<2xf32> to vector<2x1xf32>
    %20 = tpu.reciprocal %19 {approx = true} : vector<2x1xf32> -> vector<2x1xf32>
    %21 = vector.broadcast %20 : vector<2x1xf32> to vector<2x10xf32>
    %22 = arith.mulf %17, %21 : vector<2x10xf32>
    %c0_13 = arith.constant 0 : index
    %c0_14 = arith.constant 0 : index
    %23 = vector.load %arg6[%c0_13, %c0_14] : memref<2x10xf32, #tpu.memory_space<vmem>>, vector<2x10xf32>
    tpu.vector_store %arg6[%c0_13, %c0_14], %22 {strides = array<i32>} : memref<2x10xf32, #tpu.memory_space<vmem>>, vector<2x10xf32>,
    return
  }
  func.func @transform_0(%arg0: i32) -> (i32, i32) {
    %c0_i32 = arith.constant 0 : i32
    %c0_i32_0 = arith.constant 0 : i32
    return %arg0, %c0_i32 : i32, i32
  }
  func.func @transform_1(%arg0: i32) -> (i32, i32) {
    %c0_i32 = arith.constant 0 : i32
    %c0_i32_0 = arith.constant 0 : i32
    %c0_i32_1 = arith.constant 0 : i32
    return %c0_i32, %c0_i32_0 : i32, i32
  }
  func.func @transform_2(%arg0: i32) -> (i32, i32) {
    %c0_i32 = arith.constant 0 : i32
    %c0_i32_0 = arith.constant 0 : i32
    %c0_i32_1 = arith.constant 0 : i32
    return %c0_i32, %c0_i32_0 : i32, i32
  }
  func.func @transform_3(%arg0: i32) -> (i32, i32) {
    %c0_i32 = arith.constant 0 : i32
    %c0_i32_0 = arith.constant 0 : i32
    %c0_i32_1 = arith.constant 0 : i32
    return %c0_i32, %c0_i32_0 : i32, i32
  }
  func.func @transform_4(%arg0: i32) -> (i32, i32) {
    %c0_i32 = arith.constant 0 : i32
    %c0_i32_0 = arith.constant 0 : i32
    %c0_i32_1 = arith.constant 0 : i32
    return %c0_i32, %c0_i32_0 : i32, i32
  }
  func.func @transform_5(%arg0: i32) -> (i32, i32) {
    %c0_i32 = arith.constant 0 : i32
    %c0_i32_0 = arith.constant 0 : i32
    return %arg0, %c0_i32 : i32, i32
  }
}

</mosaic_0001>

<llo_original>
// kernel: lenet5_forward.2
$region0: #{lenet5_forward.2}
  #allocation0 [shape = 'u32[]', space=smem, size = 0x4, offset = 0x4, fixed_abs, tag = 'smem constant byte address 0x4 - core index']
  #allocation1 [shape = 'u32[72,128]{1,0:T(1,128)}', space=vmem, size = 0x9000, scoped, tag = 'internal scratch']
  %s0 = inlined_call_operand.vmem [shape: f32[32,64], index: 0, kind: input, shape index: {}]
  %s1 = inlined_call_operand.vmem [shape: f32[64,112], index: 1, kind: input, shape index: {}]
  %s2 = inlined_call_operand.vmem [shape: f32[1,112], index: 2, kind: input, shape index: {}]
  %s3 = inlined_call_operand.vmem [shape: f32[112,56], index: 3, kind: input, shape index: {}]
  %s4 = inlined_call_operand.vmem [shape: f32[112,56], index: 4, kind: input, shape index: {}]
  %s5 = inlined_call_operand.vmem [shape: f32[56,80], index: 5, kind: input, shape index: {}]
  %s6 = inlined_call_operand.vmem [shape: f32[1,80], index: 6, kind: input, shape index: {}]
  %s7 = inlined_call_operand.vmem [shape: f32[80,32], index: 7, kind: input, shape index: {}]
  %s8 = inlined_call_operand.vmem [shape: f32[80,32], index: 8, kind: input, shape index: {}]
  %s9 = inlined_call_operand.vmem [shape: f32[32,32], index: 9, kind: output, shape index: {}]
  %s10 = sld [smem:[#allocation0]]
  $region46: #{lenet5_forward.2} parent=0
    _
  %s12 = ssub.s32 1, %s10
  %s13 = scalar_select 0, %s12, %s10
  // Predicated region
  $region2: #{lenet5_forward.2} parent=0 // pred_check
    _
  $region3: #{lenet5_forward.2} parent=0 // pred_check_branch
    %15 = sbr.rel (0) target = $region5
  $region4: #{lenet5_forward.2} parent=0 // pred_region
    _
  $region5: #{lenet5_forward.2} parent=0 // pred_fallthru
    _
  // Predicated region
  $region6: #{lenet5_forward.2} parent=0 // pred_check
    _
  $region7: #{lenet5_forward.2} parent=0 // pred_check_branch
    %17 = sbr.rel (0) target = $region9
  $region8: #{lenet5_forward.2} parent=0 // pred_region
    _
  $region9: #{lenet5_forward.2} parent=0 // pred_fallthru
    _
  // Predicated region
  $region10: #{lenet5_forward.2} parent=0 // pred_check
    _
  $region11: #{lenet5_forward.2} parent=0 // pred_check_branch
    %19 = sbr.rel (0) target = $region13
  $region12: #{lenet5_forward.2} parent=0 // pred_region
    _
  $region13: #{lenet5_forward.2} parent=0 // pred_fallthru
    _
  // Predicated region
  $region14: #{lenet5_forward.2} parent=0 // pred_check
    _
  $region15: #{lenet5_forward.2} parent=0 // pred_check_branch
    %21 = sbr.rel (0) target = $region17
  $region16: #{lenet5_forward.2} parent=0 // pred_region
    _
  $region17: #{lenet5_forward.2} parent=0 // pred_fallthru
    _
  // Predicated region
  $region18: #{lenet5_forward.2} parent=0 // pred_check
    _
  $region19: #{lenet5_forward.2} parent=0 // pred_check_branch
    %23 = sbr.rel (0) target = $region21
  $region20: #{lenet5_forward.2} parent=0 // pred_region
    _
  $region21: #{lenet5_forward.2} parent=0 // pred_fallthru
    _
  // Predicated region
  $region22: #{lenet5_forward.2} parent=0 // pred_check
    _
  $region23: #{lenet5_forward.2} parent=0 // pred_check_branch
    %25 = sbr.rel (0) target = $region25
  $region24: #{lenet5_forward.2} parent=0 // pred_region
    _
  $region25: #{lenet5_forward.2} parent=0 // pred_fallthru
    _
  // Predicated region
  $region26: #{lenet5_forward.2} parent=0 // pred_check
    _
  $region27: #{lenet5_forward.2} parent=0 // pred_check_branch
    %27 = sbr.rel (0) target = $region29
  $region28: #{lenet5_forward.2} parent=0 // pred_region
    _
  $region29: #{lenet5_forward.2} parent=0 // pred_fallthru
    _
  // Predicated region
  $region30: #{lenet5_forward.2} parent=0 // pred_check
    _
  $region31: #{lenet5_forward.2} parent=0 // pred_check_branch
    %29 = sbr.rel (0) target = $region33
  $region32: #{lenet5_forward.2} parent=0 // pred_region
    _
  $region33: #{lenet5_forward.2} parent=0 // pred_fallthru
    _
  // Predicated region
  $region34: #{lenet5_forward.2} parent=0 // pred_check
    _
  $region35: #{lenet5_forward.2} parent=0 // pred_check_branch
    %31 = sbr.rel (0) target = $region37
  $region36: #{lenet5_forward.2} parent=0 // pred_region
    _
  $region37: #{lenet5_forward.2} parent=0 // pred_fallthru
    _
  %v32 = vld [vmem:[%s0] sm:$0xff]
  %v33 = vld [vmem:[%s0 + $0x8] sm:$0xff]
  %v34 = vld [vmem:[%s0 + $0x10] sm:$0xff]
  %v35 = vld [vmem:[%s0 + $0x18] sm:$0xff]
  %v36 = vld [vmem:[%s1] sm:$0xff]
  %v37 = vld [vmem:[%s1 + $0x8] sm:$0xff]
  %v38 = vld [vmem:[%s1 + $0x10] sm:$0xff]
  %v39 = vld [vmem:[%s1 + $0x18] sm:$0xff]
  %v40 = vld [vmem:[%s1 + $0x20] sm:$0xff]
  %v41 = vld [vmem:[%s1 + $0x28] sm:$0xff]
  %v42 = vld [vmem:[%s1 + $0x30] sm:$0xff]
  %v43 = vld [vmem:[%s1 + $0x38] sm:$0xff]
  %v44 = vld [vmem:[%s2] sm:$0x1]
  %v46 = vperm.slane %v44, 0
  %vm48 = vcmask 523264
  %v50 = vsel %vm48, %v32, 0
  %v53 = vsel %vm48, %v33, 0
  %v56 = vsel %vm48, %v34, 0
  %v59 = vsel %vm48, %v35, 0
  %61 = vmatpush.msra.mxu0 0.0
  %62 = vmatpush.msra.mxu0 0.0
  %63 = vmatpush.msra.mxu0 0.0
  %64 = vmatpush.msra.mxu0 0.0
  %65 = vmatpush.msra.mxu0 0.0
  %66 = vmatpush.msra.mxu0 0.0
  %67 = vmatpush.msra.mxu0 0.0
  %68 = vmatpush.msra.mxu0 0.0
  %69 = vmatpush.msra.mxu0 %v43
  %70 = vmatpush.msra.mxu0 %v42
  %71 = vmatpush.msra.mxu0 %v41
  %72 = vmatpush.msra.mxu0 %v40
  %73 = vmatpush.msra.mxu0 %v39
  %74 = vmatpush.msra.mxu0 %v38
  %75 = vmatpush.msra.mxu0 %v37
  %76 = vmatpush.msra.mxu0 %v36
  %77 = vmatmul.f32.gmra.mxu0 %v50
  %v78 = vpop.f32.mrf.mxu0
  %v79 = vadd.f32 %v46, %v78
  %80 = vmatmul.f32.gmra.mxu0 %v53
  %v81 = vpop.f32.mrf.mxu0
  %v82 = vadd.f32 %v46, %v81
  %83 = vmatmul.f32.gmra.mxu0 %v56
  %v84 = vpop.f32.mrf.mxu0
  %v85 = vadd.f32 %v46, %v84
  %86 = vmatmul.f32.gmra.mxu0 %v59
  %v87 = vpop.f32.mrf.mxu0
  %v88 = vadd.f32 %v46, %v87
  %89 = vdwg.mxu0
  %v90 = vmax.f32 %v79, 0.0
  %v91 = vmax.f32 %v82, 0.0
  %v92 = vmax.f32 %v85, 0.0
  %v93 = vmax.f32 %v88, 0.0
  %v94 = vld [vmem:[%s3] sm:$0xff]
  %v95 = vld [vmem:[%s3 + $0x8] sm:$0xff]
  %v96 = vld [vmem:[%s3 + $0x10] sm:$0xff]
  %v97 = vld [vmem:[%s3 + $0x18] sm:$0xff]
  %v98 = vld [vmem:[%s3 + $0x20] sm:$0xff]
  %v99 = vld [vmem:[%s3 + $0x28] sm:$0xff]
  %v100 = vld [vmem:[%s3 + $0x30] sm:$0xff]
  %v101 = vld [vmem:[%s3 + $0x38] sm:$0xff]
  %v102 = vld [vmem:[%s3 + $0x40] sm:$0xff]
  %v103 = vld [vmem:[%s3 + $0x48] sm:$0xff]
  %v104 = vld [vmem:[%s3 + $0x50] sm:$0xff]
  %v105 = vld [vmem:[%s3 + $0x58] sm:$0xff]
  %v106 = vld [vmem:[%s3 + $0x60] sm:$0xff]
  %v107 = vld [vmem:[%s3 + $0x68] sm:$0xff]
  %vm108 = vcmask 916480
  %v110 = vsel %vm108, %v90, 0
  %v113 = vsel %vm108, %v91, 0
  %v116 = vsel %vm108, %v92, 0
  %v119 = vsel %vm108, %v93, 0
  %121 = vmatpush.msra.mxu0 0.0
  %122 = vmatpush.msra.mxu0 0.0
  %123 = vmatpush.msra.mxu0 %v107
  %124 = vmatpush.msra.mxu0 %v106
  %125 = vmatpush.msra.mxu0 %v105
  %126 = vmatpush.msra.mxu0 %v104
  %127 = vmatpush.msra.mxu0 %v103
  %128 = vmatpush.msra.mxu0 %v102
  %129 = vmatpush.msra.mxu0 %v101
  %130 = vmatpush.msra.mxu0 %v100
  %131 = vmatpush.msra.mxu0 %v99
  %132 = vmatpush.msra.mxu0 %v98
  %133 = vmatpush.msra.mxu0 %v97
  %134 = vmatpush.msra.mxu0 %v96
  %135 = vmatpush.msra.mxu0 %v95
  %136 = vmatpush.msra.mxu0 %v94
  %137 = vmatmul.f32.gmra.mxu0 %v110
  %v138 = vpop.f32.mrf.mxu0
  %v139 = vadd.f32 0.0, %v138
  %140 = vmatmul.f32.gmra.mxu0 %v113
  %v141 = vpop.f32.mrf.mxu0
  %v142 = vadd.f32 0.0, %v141
  %143 = vmatmul.f32.gmra.mxu0 %v116
  %v144 = vpop.f32.mrf.mxu0
  %v145 = vadd.f32 0.0, %v144
  %146 = vmatmul.f32.gmra.mxu0 %v119
  %v147 = vpop.f32.mrf.mxu0
  %v148 = vadd.f32 0.0, %v147
  %149 = vdwg.mxu0
  %v150 = vld [vmem:[%s4] sm:$0xff]
  %v151 = vld [vmem:[%s4 + $0x8] sm:$0xff]
  %v152 = vld [vmem:[%s4 + $0x10] sm:$0xff]
  %v153 = vld [vmem:[%s4 + $0x18] sm:$0xff]
  %v154 = vld [vmem:[%s4 + $0x20] sm:$0xff]
  %v155 = vld [vmem:[%s4 + $0x28] sm:$0xff]
  %v156 = vld [vmem:[%s4 + $0x30] sm:$0xff]
  %v157 = vld [vmem:[%s4 + $0x38] sm:$0xff]
  %v158 = vld [vmem:[%s4 + $0x40] sm:$0xff]
  %v159 = vld [vmem:[%s4 + $0x48] sm:$0xff]
  %v160 = vld [vmem:[%s4 + $0x50] sm:$0xff]
  %v161 = vld [vmem:[%s4 + $0x58] sm:$0xff]
  %v162 = vld [vmem:[%s4 + $0x60] sm:$0xff]
  %v163 = vld [vmem:[%s4 + $0x68] sm:$0xff]
  %164 = vmatpush.msra.mxu0 0.0
  %165 = vmatpush.msra.mxu0 0.0
  %166 = vmatpush.msra.mxu0 %v163
  %167 = vmatpush.msra.mxu0 %v162
  %168 = vmatpush.msra.mxu0 %v161
  %169 = vmatpush.msra.mxu0 %v160
  %170 = vmatpush.msra.mxu0 %v159
  %171 = vmatpush.msra.mxu0 %v158
  %172 = vmatpush.msra.mxu0 %v157
  %173 = vmatpush.msra.mxu0 %v156
  %174 = vmatpush.msra.mxu0 %v155
  %175 = vmatpush.msra.mxu0 %v154
  %176 = vmatpush.msra.mxu0 %v153
  %177 = vmatpush.msra.mxu0 %v152
  %178 = vmatpush.msra.mxu0 %v151
  %179 = vmatpush.msra.mxu0 %v150
  %180 = vmatmul.f32.gmra.mxu0 %v110
  %v181 = vpop.f32.mrf.mxu0
  %v182 = vadd.f32 0.0, %v181
  %183 = vmatmul.f32.gmra.mxu0 %v113
  %v184 = vpop.f32.mrf.mxu0
  %v185 = vadd.f32 0.0, %v184
  %186 = vmatmul.f32.gmra.mxu0 %v116
  %v187 = vpop.f32.mrf.mxu0
  %v188 = vadd.f32 0.0, %v187
  %189 = vmatmul.f32.gmra.mxu0 %v119
  %v190 = vpop.f32.mrf.mxu0
  %v191 = vadd.f32 0.0, %v190
  %192 = vdwg.mxu0
  %v193 = vmax.f32 %v139, %v182
  %v194 = vmax.f32 %v142, %v185
  %v195 = vmax.f32 %v145, %v188
  %v196 = vmax.f32 %v148, %v191
  %v197 = vld [vmem:[%s5] sm:$0xff]
  %v198 = vld [vmem:[%s5 + $0x8] sm:$0xff]
  %v199 = vld [vmem:[%s5 + $0x10] sm:$0xff]
  %v200 = vld [vmem:[%s5 + $0x18] sm:$0xff]
  %v201 = vld [vmem:[%s5 + $0x20] sm:$0xff]
  %v202 = vld [vmem:[%s5 + $0x28] sm:$0xff]
  %v203 = vld [vmem:[%s5 + $0x30] sm:$0xff]
  %v204 = vld [vmem:[%s6] sm:$0x1]
  %v206 = vperm.slane %v204, 0
  %vm208 = vcmask 457728
  %v210 = vsel %vm208, %v193, 0
  %v213 = vsel %vm208, %v194, 0
  %v216 = vsel %vm208, %v195, 0
  %v219 = vsel %vm208, %v196, 0
  %221 = vmatpush.msra.mxu0 0.0
  %222 = vmatpush.msra.mxu0 0.0
  %223 = vmatpush.msra.mxu0 0.0
  %224 = vmatpush.msra.mxu0 0.0
  %225 = vmatpush.msra.mxu0 0.0
  %226 = vmatpush.msra.mxu0 0.0
  %227 = vmatpush.msra.mxu0 0.0
  %228 = vmatpush.msra.mxu0 0.0
  %229 = vmatpush.msra.mxu0 0.0
  %230 = vmatpush.msra.mxu0 %v203
  %231 = vmatpush.msra.mxu0 %v202
  %232 = vmatpush.msra.mxu0 %v201
  %233 = vmatpush.msra.mxu0 %v200
  %234 = vmatpush.msra.mxu0 %v199
  %235 = vmatpush.msra.mxu0 %v198
  %236 = vmatpush.msra.mxu0 %v197
  %237 = vmatmul.f32.gmra.mxu0 %v210
  %v238 = vpop.f32.mrf.mxu0
  %v239 = vadd.f32 %v206, %v238
  %240 = vmatmul.f32.gmra.mxu0 %v213
  %v241 = vpop.f32.mrf.mxu0
  %v242 = vadd.f32 %v206, %v241
  %243 = vmatmul.f32.gmra.mxu0 %v216
  %v244 = vpop.f32.mrf.mxu0
  %v245 = vadd.f32 %v206, %v244
  %246 = vmatmul.f32.gmra.mxu0 %v219
  %v247 = vpop.f32.mrf.mxu0
  %v248 = vadd.f32 %v206, %v247
  %249 = vdwg.mxu0
  %v250 = vmax.f32 %v239, 0.0
  %v251 = vmax.f32 %v242, 0.0
  %v252 = vmax.f32 %v245, 0.0
  %v253 = vmax.f32 %v248, 0.0
  %v254 = vld [vmem:[%s7] sm:$0xff]
  %v255 = vld [vmem:[%s7 + $0x8] sm:$0xff]
  %v256 = vld [vmem:[%s7 + $0x10] sm:$0xff]
  %v257 = vld [vmem:[%s7 + $0x18] sm:$0xff]
  %v258 = vld [vmem:[%s7 + $0x20] sm:$0xff]
  %v259 = vld [vmem:[%s7 + $0x28] sm:$0xff]
  %v260 = vld [vmem:[%s7 + $0x30] sm:$0xff]
  %v261 = vld [vmem:[%s7 + $0x38] sm:$0xff]
  %v262 = vld [vmem:[%s7 + $0x40] sm:$0xff]
  %v263 = vld [vmem:[%s7 + $0x48] sm:$0xff]
  %vm264 = vcmask 654336
  %v266 = vsel %vm264, %v250, 0
  %v269 = vsel %vm264, %v251, 0
  %v272 = vsel %vm264, %v252, 0
  %v275 = vsel %vm264, %v253, 0
  %277 = vmatpush.msra.mxu0 0.0
  %278 = vmatpush.msra.mxu0 0.0
  %279 = vmatpush.msra.mxu0 0.0
  %280 = vmatpush.msra.mxu0 0.0
  %281 = vmatpush.msra.mxu0 0.0
  %282 = vmatpush.msra.mxu0 0.0
  %283 = vmatpush.msra.mxu0 %v263
  %284 = vmatpush.msra.mxu0 %v262
  %285 = vmatpush.msra.mxu0 %v261
  %286 = vmatpush.msra.mxu0 %v260
  %287 = vmatpush.msra.mxu0 %v259
  %288 = vmatpush.msra.mxu0 %v258
  %289 = vmatpush.msra.mxu0 %v257
  %290 = vmatpush.msra.mxu0 %v256
  %291 = vmatpush.msra.mxu0 %v255
  %292 = vmatpush.msra.mxu0 %v254
  %293 = vmatmul.f32.gmra.mxu0 %v266
  %v294 = vpop.f32.mrf.mxu0
  %v295 = vadd.f32 0.0, %v294
  %296 = vmatmul.f32.gmra.mxu0 %v269
  %v297 = vpop.f32.mrf.mxu0
  %v298 = vadd.f32 0.0, %v297
  %299 = vmatmul.f32.gmra.mxu0 %v272
  %v300 = vpop.f32.mrf.mxu0
  %v301 = vadd.f32 0.0, %v300
  %302 = vmatmul.f32.gmra.mxu0 %v275
  %v303 = vpop.f32.mrf.mxu0
  %v304 = vadd.f32 0.0, %v303
  %305 = vdwg.mxu0
  %v306 = vld [vmem:[%s8] sm:$0xff]
  %v307 = vld [vmem:[%s8 + $0x8] sm:$0xff]
  %v308 = vld [vmem:[%s8 + $0x10] sm:$0xff]
  %v309 = vld [vmem:[%s8 + $0x18] sm:$0xff]
  %v310 = vld [vmem:[%s8 + $0x20] sm:$0xff]
  %v311 = vld [vmem:[%s8 + $0x28] sm:$0xff]
  %v312 = vld [vmem:[%s8 + $0x30] sm:$0xff]
  %v313 = vld [vmem:[%s8 + $0x38] sm:$0xff]
  %v314 = vld [vmem:[%s8 + $0x40] sm:$0xff]
  %v315 = vld [vmem:[%s8 + $0x48] sm:$0xff]
  %316 = vmatpush.msra.mxu0 0.0
  %317 = vmatpush.msra.mxu0 0.0
  %318 = vmatpush.msra.mxu0 0.0
  %319 = vmatpush.msra.mxu0 0.0
  %320 = vmatpush.msra.mxu0 0.0
  %321 = vmatpush.msra.mxu0 0.0
  %322 = vmatpush.msra.mxu0 %v315
  %323 = vmatpush.msra.mxu0 %v314
  %324 = vmatpush.msra.mxu0 %v313
  %325 = vmatpush.msra.mxu0 %v312
  %326 = vmatpush.msra.mxu0 %v311
  %327 = vmatpush.msra.mxu0 %v310
  %328 = vmatpush.msra.mxu0 %v309
  %329 = vmatpush.msra.mxu0 %v308
  %330 = vmatpush.msra.mxu0 %v307
  %331 = vmatpush.msra.mxu0 %v306
  %332 = vmatmul.f32.gmra.mxu0 %v266
  %v333 = vpop.f32.mrf.mxu0
  %v334 = vadd.f32 0.0, %v333
  %335 = vmatmul.f32.gmra.mxu0 %v269
  %v336 = vpop.f32.mrf.mxu0
  %v337 = vadd.f32 0.0, %v336
  %338 = vmatmul.f32.gmra.mxu0 %v272
  %v339 = vpop.f32.mrf.mxu0
  %v340 = vadd.f32 0.0, %v339
  %341 = vmatmul.f32.gmra.mxu0 %v275
  %v342 = vpop.f32.mrf.mxu0
  %v343 = vadd.f32 0.0, %v342
  %344 = vdwg.mxu0
  %v345 = vmax.f32 %v295, %v334
  %v346 = vmax.f32 %v298, %v337
  %v347 = vmax.f32 %v301, %v340
  %v348 = vmax.f32 %v304, %v343
  %vm349 = vcmask 261120
  %350 = vst.msk [vmem:[%s9] sm:$0xff] %vm349, %v345
  %351 = vst.msk [vmem:[%s9 + $0x8] sm:$0xff] %vm349, %v346
  %352 = vst.msk [vmem:[%s9 + $0x10] sm:$0xff] %vm349, %v347
  %353 = vst.msk [vmem:[%s9 + $0x18] sm:$0xff] %vm349, %v348
  // Predicated region
  $region38: #{lenet5_forward.2} parent=0 // pred_check
    _
  $region39: #{lenet5_forward.2} parent=0 // pred_check_branch
    %355 = sbr.rel (0) target = $region41
  $region40: #{lenet5_forward.2} parent=0 // pred_region
    _
  $region41: #{lenet5_forward.2} parent=0 // pred_fallthru
    _
  // Predicated region
  $region42: #{lenet5_forward.2} parent=0 // pred_check
    _
  $region43: #{lenet5_forward.2} parent=0 // pred_check_branch
    %357 = sbr.rel (0) target = $region45
  $region44: #{lenet5_forward.2} parent=0 // pred_region
    _
  $region45: #{lenet5_forward.2} parent=0 // pred_fallthru
    _

// kernel: lenet5_forward.3
$region0: #{lenet5_forward.3}
  #allocation0 [shape = 'u32[]', space=smem, size = 0x4, offset = 0x4, fixed_abs, tag = 'smem constant byte address 0x4 - core index']
  #allocation1 [shape = 'u32[72,128]{1,0:T(1,128)}', space=vmem, size = 0x9000, scoped, tag = 'internal scratch']
  %s0 = inlined_call_operand.vmem [shape: f32[2,512], index: 0, kind: input, shape index: {}]
  %s1 = inlined_call_operand.vmem [shape: f32[512,32], index: 1, kind: input, shape index: {}]
  %s2 = inlined_call_operand.vmem [shape: f32[1,32], index: 2, kind: input, shape index: {}]
  %s3 = inlined_call_operand.vmem [shape: f32[32,10], index: 3, kind: input, shape index: {}]
  %s4 = inlined_call_operand.vmem [shape: f32[1,10], index: 4, kind: input, shape index: {}]
  %s5 = inlined_call_operand.hbm [shape: f32[2,10], index: 5, kind: output, shape index: {}]
  %s6 = sld [smem:[#allocation0]]
  $region30: #{lenet5_forward.3} parent=0
    _
  %s8 = ssub.s32 1, %s6
  %s9 = scalar_select 0, %s8, %s6
  $region1: #{lenet5_forward.3} parent=0
    #allocation2 [shape = 'u8[1024]{0}', space=vmem, size = 0x400, scoped, tag = 'output window, operand 0, single buffered']
    #allocation3 [shape = 's32[1]{0}', space=sflag, size = 0x4, scoped, tag = 'scoped memory for lenet5_forward.3']
    %10 = vsyncpa [#allocation3], 0
    // Predicated region
    $region2: #{lenet5_forward.3} parent=1 // pred_check
      _
    $region3: #{lenet5_forward.3} parent=1 // pred_check_branch
      %12 = sbr.rel (0) target = $region5
    $region4: #{lenet5_forward.3} parent=1 // pred_region
      _
    $region5: #{lenet5_forward.3} parent=1 // pred_fallthru
      _
    // Predicated region
    $region6: #{lenet5_forward.3} parent=1 // pred_check
      _
    $region7: #{lenet5_forward.3} parent=1 // pred_check_branch
      %14 = sbr.rel (0) target = $region9
    $region8: #{lenet5_forward.3} parent=1 // pred_region
      _
    $region9: #{lenet5_forward.3} parent=1 // pred_fallthru
      _
    // Predicated region
    $region10: #{lenet5_forward.3} parent=1 // pred_check
      _
    $region11: #{lenet5_forward.3} parent=1 // pred_check_branch
      %16 = sbr.rel (0) target = $region13
    $region12: #{lenet5_forward.3} parent=1 // pred_region
      _
    $region13: #{lenet5_forward.3} parent=1 // pred_fallthru
      _
    // Predicated region
    $region14: #{lenet5_forward.3} parent=1 // pred_check
      _
    $region15: #{lenet5_forward.3} parent=1 // pred_check_branch
      %18 = sbr.rel (0) target = $region17
    $region16: #{lenet5_forward.3} parent=1 // pred_region
      _
    $region17: #{lenet5_forward.3} parent=1 // pred_fallthru
      _
    // Predicated region
    $region18: #{lenet5_forward.3} parent=1 // pred_check
      _
    $region19: #{lenet5_forward.3} parent=1 // pred_check_branch
      %20 = sbr.rel (0) target = $region21
    $region20: #{lenet5_forward.3} parent=1 // pred_region
      _
    $region21: #{lenet5_forward.3} parent=1 // pred_fallthru
      _
    %v21 = vld [vmem:[%s0] sm:$0xff]
    %v22 = vld [vmem:[%s1] sm:$0xff]
    %v23 = vld [vmem:[%s1 + $0x8] sm:$0xff]
    %v24 = vld [vmem:[%s1 + $0x10] sm:$0xff]
    %v25 = vld [vmem:[%s1 + $0x18] sm:$0xff]
    %v26 = vld [vmem:[%s1 + $0x20] sm:$0xff]
    %v27 = vld [vmem:[%s1 + $0x28] sm:$0xff]
    %v28 = vld [vmem:[%s1 + $0x30] sm:$0xff]
    %v29 = vld [vmem:[%s1 + $0x38] sm:$0xff]
    %v30 = vld [vmem:[%s1 + $0x40] sm:$0xff]
    %v31 = vld [vmem:[%s1 + $0x48] sm:$0xff]
    %v32 = vld [vmem:[%s1 + $0x50] sm:$0xff]
    %v33 = vld [vmem:[%s1 + $0x58] sm:$0xff]
    %v34 = vld [vmem:[%s1 + $0x60] sm:$0xff]
    %v35 = vld [vmem:[%s1 + $0x68] sm:$0xff]
    %v36 = vld [vmem:[%s1 + $0x70] sm:$0xff]
    %v37 = vld [vmem:[%s1 + $0x78] sm:$0xff]
    %v38 = vld [vmem:[%s1 + $0x80] sm:$0xff]
    %v39 = vld [vmem:[%s1 + $0x88] sm:$0xff]
    %v40 = vld [vmem:[%s1 + $0x90] sm:$0xff]
    %v41 = vld [vmem:[%s1 + $0x98] sm:$0xff]
    %v42 = vld [vmem:[%s1 + $0xa0] sm:$0xff]
    %v43 = vld [vmem:[%s1 + $0xa8] sm:$0xff]
    %v44 = vld [vmem:[%s1 + $0xb0] sm:$0xff]
    %v45 = vld [vmem:[%s1 + $0xb8] sm:$0xff]
    %v46 = vld [vmem:[%s1 + $0xc0] sm:$0xff]
    %v47 = vld [vmem:[%s1 + $0xc8] sm:$0xff]
    %v48 = vld [vmem:[%s1 + $0xd0] sm:$0xff]
    %v49 = vld [vmem:[%s1 + $0xd8] sm:$0xff]
    %v50 = vld [vmem:[%s1 + $0xe0] sm:$0xff]
    %v51 = vld [vmem:[%s1 + $0xe8] sm:$0xff]
    %v52 = vld [vmem:[%s1 + $0xf0] sm:$0xff]
    %v53 = vld [vmem:[%s1 + $0xf8] sm:$0xff]
    %v54 = vld [vmem:[%s1 + $0x100] sm:$0xff]
    %v55 = vld [vmem:[%s1 + $0x108] sm:$0xff]
    %v56 = vld [vmem:[%s1 + $0x110] sm:$0xff]
    %v57 = vld [vmem:[%s1 + $0x118] sm:$0xff]
    %v58 = vld [vmem:[%s1 + $0x120] sm:$0xff]
    %v59 = vld [vmem:[%s1 + $0x128] sm:$0xff]
    %v60 = vld [vmem:[%s1 + $0x130] sm:$0xff]
    %v61 = vld [vmem:[%s1 + $0x138] sm:$0xff]
    %v62 = vld [vmem:[%s1 + $0x140] sm:$0xff]
    %v63 = vld [vmem:[%s1 + $0x148] sm:$0xff]
    %v64 = vld [vmem:[%s1 + $0x150] sm:$0xff]
    %v65 = vld [vmem:[%s1 + $0x158] sm:$0xff]
    %v66 = vld [vmem:[%s1 + $0x160] sm:$0xff]
    %v67 = vld [vmem:[%s1 + $0x168] sm:$0xff]
    %v68 = vld [vmem:[%s1 + $0x170] sm:$0xff]
    %v69 = vld [vmem:[%s1 + $0x178] sm:$0xff]
    %v70 = vld [vmem:[%s1 + $0x180] sm:$0xff]
    %v71 = vld [vmem:[%s1 + $0x188] sm:$0xff]
    %v72 = vld [vmem:[%s1 + $0x190] sm:$0xff]
    %v73 = vld [vmem:[%s1 + $0x198] sm:$0xff]
    %v74 = vld [vmem:[%s1 + $0x1a0] sm:$0xff]
    %v75 = vld [vmem:[%s1 + $0x1a8] sm:$0xff]
    %v76 = vld [vmem:[%s1 + $0x1b0] sm:$0xff]
    %v77 = vld [vmem:[%s1 + $0x1b8] sm:$0xff]
    %v78 = vld [vmem:[%s1 + $0x1c0] sm:$0xff]
    %v79 = vld [vmem:[%s1 + $0x1c8] sm:$0xff]
    %v80 = vld [vmem:[%s1 + $0x1d0] sm:$0xff]
    %v81 = vld [vmem:[%s1 + $0x1d8] sm:$0xff]
    %v82 = vld [vmem:[%s1 + $0x1e0] sm:$0xff]
    %v83 = vld [vmem:[%s1 + $0x1e8] sm:$0xff]
    %v84 = vld [vmem:[%s1 + $0x1f0] sm:$0xff]
    %v85 = vld [vmem:[%s1 + $0x1f8] sm:$0xff]
    %v86 = vld [vmem:[%s2] sm:$0x1]
    %v88 = vperm.slane %v86, 0
    %91 = vst [vmem:[#allocation1] ss:$4 sm:$0xff] %v21
    %v92 = vld.sshfl [vmem:[#allocation1] sm:$0xff pattern:$0x73625140]
    %v93 = vld.sshfl [vmem:[#allocation1 + $0x8] sm:$0xff pattern:$0x73625140]
    %v94 = vld.sshfl [vmem:[#allocation1 + $0x10] sm:$0xff pattern:$0x73625140]
    %v95 = vld.sshfl [vmem:[#allocation1 + $0x18] sm:$0xff pattern:$0x73625140]
    %100 = vmatpush.msra.mxu0 %v37
    %101 = vmatpush.msra.mxu0 %v36
    %102 = vmatpush.msra.mxu0 %v35
    %103 = vmatpush.msra.mxu0 %v34
    %104 = vmatpush.msra.mxu0 %v33
    %105 = vmatpush.msra.mxu0 %v32
    %106 = vmatpush.msra.mxu0 %v31
    %107 = vmatpush.msra.mxu0 %v30
    %108 = vmatpush.msra.mxu0 %v29
    %109 = vmatpush.msra.mxu0 %v28
    %110 = vmatpush.msra.mxu0 %v27
    %111 = vmatpush.msra.mxu0 %v26
    %112 = vmatpush.msra.mxu0 %v25
    %113 = vmatpush.msra.mxu0 %v24
    %114 = vmatpush.msra.mxu0 %v23
    %115 = vmatpush.msra.mxu0 %v22
    %116 = vmatmul.f32.gmra.mxu0 %v92
    %v117 = vpop.f32.mrf.mxu0
    %v118 = vadd.f32 %v88, %v117
    %119 = vdwg.mxu0
    %120 = vmatpush.msra.mxu0 %v53
    %121 = vmatpush.msra.mxu0 %v52
    %122 = vmatpush.msra.mxu0 %v51
    %123 = vmatpush.msra.mxu0 %v50
    %124 = vmatpush.msra.mxu0 %v49
    %125 = vmatpush.msra.mxu0 %v48
    %126 = vmatpush.msra.mxu0 %v47
    %127 = vmatpush.msra.mxu0 %v46
    %128 = vmatpush.msra.mxu0 %v45
    %129 = vmatpush.msra.mxu0 %v44
    %130 = vmatpush.msra.mxu0 %v43
    %131 = vmatpush.msra.mxu0 %v42
    %132 = vmatpush.msra.mxu0 %v41
    %133 = vmatpush.msra.mxu0 %v40
    %134 = vmatpush.msra.mxu0 %v39
    %135 = vmatpush.msra.mxu0 %v38
    %136 = vmatmul.f32.gmra.mxu0 %v93
    %v137 = vpop.f32.mrf.mxu0
    %v138 = vadd.f32 %v118, %v137
    %139 = vdwg.mxu0
    %140 = vmatpush.msra.mxu0 %v69
    %141 = vmatpush.msra.mxu0 %v68
    %142 = vmatpush.msra.mxu0 %v67
    %143 = vmatpush.msra.mxu0 %v66
    %144 = vmatpush.msra.mxu0 %v65
    %145 = vmatpush.msra.mxu0 %v64
    %146 = vmatpush.msra.mxu0 %v63
    %147 = vmatpush.msra.mxu0 %v62
    %148 = vmatpush.msra.mxu0 %v61
    %149 = vmatpush.msra.mxu0 %v60
    %150 = vmatpush.msra.mxu0 %v59
    %151 = vmatpush.msra.mxu0 %v58
    %152 = vmatpush.msra.mxu0 %v57
    %153 = vmatpush.msra.mxu0 %v56
    %154 = vmatpush.msra.mxu0 %v55
    %155 = vmatpush.msra.mxu0 %v54
    %156 = vmatmul.f32.gmra.mxu0 %v94
    %v157 = vpop.f32.mrf.mxu0
    %v158 = vadd.f32 %v138, %v157
    %159 = vdwg.mxu0
    %160 = vmatpush.msra.mxu0 %v85
    %161 = vmatpush.msra.mxu0 %v84
    %162 = vmatpush.msra.mxu0 %v83
    %163 = vmatpush.msra.mxu0 %v82
    %164 = vmatpush.msra.mxu0 %v81
    %165 = vmatpush.msra.mxu0 %v80
    %166 = vmatpush.msra.mxu0 %v79
    %167 = vmatpush.msra.mxu0 %v78
    %168 = vmatpush.msra.mxu0 %v77
    %169 = vmatpush.msra.mxu0 %v76
    %170 = vmatpush.msra.mxu0 %v75
    %171 = vmatpush.msra.mxu0 %v74
    %172 = vmatpush.msra.mxu0 %v73
    %173 = vmatpush.msra.mxu0 %v72
    %174 = vmatpush.msra.mxu0 %v71
    %175 = vmatpush.msra.mxu0 %v70
    %176 = vmatmul.f32.gmra.mxu0 %v95
    %v177 = vpop.f32.mrf.mxu0
    %v178 = vadd.f32 %v158, %v177
    %179 = vdwg.mxu0
    %v180 = vmax.f32 %v178, 0.0
    %v181 = vld [vmem:[%s3] sm:$0xff]
    %v182 = vld [vmem:[%s3 + $0x8] sm:$0xff]
    %v183 = vld [vmem:[%s3 + $0x10] sm:$0xff]
    %v184 = vld [vmem:[%s3 + $0x18] sm:$0xff]
    %v185 = vld [vmem:[%s4] sm:$0x1]
    %v187 = vperm.slane %v185, 0
    %vm189 = vcmask 261120
    %v191 = vsel %vm189, %v180, 0
    %193 = vmatpush.msra.mxu0 0.0
    %194 = vmatpush.msra.mxu0 0.0
    %195 = vmatpush.msra.mxu0 0.0
    %196 = vmatpush.msra.mxu0 0.0
    %197 = vmatpush.msra.mxu0 0.0
    %198 = vmatpush.msra.mxu0 0.0
    %199 = vmatpush.msra.mxu0 0.0
    %200 = vmatpush.msra.mxu0 0.0
    %201 = vmatpush.msra.mxu0 0.0
    %202 = vmatpush.msra.mxu0 0.0
    %203 = vmatpush.msra.mxu0 0.0
    %204 = vmatpush.msra.mxu0 0.0
    %205 = vmatpush.msra.mxu0 %v184
    %206 = vmatpush.msra.mxu0 %v183
    %207 = vmatpush.msra.mxu0 %v182
    %208 = vmatpush.msra.mxu0 %v181
    %209 = vmatmul.f32.gmra.mxu0 %v191
    %v210 = vpop.f32.mrf.mxu0
    %v211 = vadd.f32 %v187, %v210
    %212 = vdwg.mxu0
    %vm213 = vcmask 74752
    %v214 = vsel %vm213, %v211, -inf
    %215 = vmax.xlane.f32.xlu0 %v214
    %v216 = vpop.xlane.xlu0 %215
    %v217 = vsub.f32 %v211, %v216
    %v218 = vmul.f32 %v217, 1.442695
    %v219 = vpow.pop %v218
    %v220 = vsel %vm213, %v219, 0.0
    %221 = vadd.xlane.f32.xlu0 %v220
    %v222 = vpop.xlane.xlu0 %221
    %v223 = vrcp.pop %v222
    %v224 = vmul.f32 %v219, %v223
    %225 = vst.msk [vmem:[#allocation2] sm:$0x3] %vm213, %v224
    // Predicated region
    $region22: #{lenet5_forward.3} parent=1 // pred_check
      _
    $region23: #{lenet5_forward.3} parent=1 // pred_check_branch
      %227 = sbr.rel (0) target = $region25
    $region24: #{lenet5_forward.3} parent=1 // pred_region
      %229 = vsyncadd [#allocation3], 0
      %s231 = sshll.u32 [#allocation2], 4
      %s232 = int_to_ptr.vmem [resolvable:$true] %s231
      %s233 = sshll.u32 %s5, 4
      %s234 = int_to_ptr.hbm [resolvable:$true] %s233
      %236 = dma.vmem_to_hbm [thread:$0]  %s232, 32, %s234, [#allocation3]
    $region25: #{lenet5_forward.3} parent=1 // pred_fallthru
      _
    // Predicated region
    $region26: #{lenet5_forward.3} parent=1 // pred_check
      _
    $region27: #{lenet5_forward.3} parent=1 // pred_check_branch
      %238 = sbr.rel (0) target = $region29
    $region28: #{lenet5_forward.3} parent=1 // pred_region
      %240 = dma.done [#allocation3], 32
    $region29: #{lenet5_forward.3} parent=1 // pred_fallthru
      _
    %241 = vsyncpa [#allocation3], 1

</llo_original>
